<compile_context>
chip_gen: v6e
topology: v6e:2x2x1
jax: 0.10.0
libtpu: 0.0.40
codegen_flags: <defaults>
</compile_context>

<pallas_src>
import functools
import math

import jax
import jax.numpy as jnp
import numpy as np
from jax.experimental import pallas as pl
from jax.experimental.pallas import tpu as pltpu

# ----------------------------- module config -------------------------------
ANCHOR_AREAS = [32 * 32.0, 64 * 64.0, 128 * 128.0, 256 * 256.0, 512 * 512.0]
ASPECT_RATIOS = [1 / 2.0, 1 / 1.0, 2 / 1.0]
SCALE_RATIOS = [1.0, pow(2, 1 / 3.0), pow(2, 2 / 3.0)]
IUO_FIT_THR = 0.5
IUO_NOFIT_THR = 0.4

# Tiling: each (NOBJ_PAD, TILE_A) temp targets ~ELEM_BUDGET elements (~8 vregs)
ELEM_BUDGET = 8192
MAX_TILE_A = 2048
MIN_TILE_A = 128
NOBJ_BUCKETS = (8, 16, 32, 64, 128)

FAR_AWAY = -1.0e8   # padded-object coordinate (IoU with any anchor == 0)


def _cdiv(a, b):
    return -(-a // b)


# --------------------------- anchor generation -----------------------------
def _get_anchor_wh():
    anchor_wh = []
    for s in ANCHOR_AREAS:
        for ar in ASPECT_RATIOS:
            h = math.sqrt(s / ar)
            w = ar * h
            for sr in SCALE_RATIOS:
                anchor_wh.append([w * sr, h * sr])
    return np.asarray(anchor_wh, dtype=np.float32).reshape(len(ANCHOR_AREAS), -1, 2)


ANCHOR_WH = _get_anchor_wh()
NUM_ANCHORS = len(ASPECT_RATIOS) * len(SCALE_RATIOS)


def _get_anchor_boxes(input_size_wh):
    """input_size_wh: (w, h). Returns [A, 4] float32 (cx, cy, w, h)."""
    input_size = np.asarray(input_size_wh, dtype=np.float32)
    num_fms = len(ANCHOR_AREAS)
    boxes = []
    for i in range(num_fms):
        fm_size = np.ceil(input_size / 2.0 ** (i + 3))
        grid_size = input_size / fm_size
        fm_w, fm_h = int(fm_size[0]), int(fm_size[1])
        xs = np.arange(fm_w, dtype=np.float32)
        ys = np.arange(fm_h, dtype=np.float32)
        xx = np.tile(xs, fm_h).reshape(-1, 1)          # x varies fastest
        yy = np.repeat(ys, fm_w).reshape(-1, 1)
        xy = (np.concatenate([xx, yy], axis=1) + 0.5) * grid_size
        xy = np.broadcast_to(xy.reshape(fm_h, fm_w, 1, 2),
                             (fm_h, fm_w, NUM_ANCHORS, 2))
        wh = np.broadcast_to(ANCHOR_WH[i].reshape(1, 1, NUM_ANCHORS, 2),
                             (fm_h, fm_w, NUM_ANCHORS, 2))
        box = np.concatenate([xy, wh], axis=3).reshape(-1, 4)
        boxes.append(box)
    return np.concatenate(boxes, axis=0).astype(np.float32)


# ------------------------------ tiling policy --------------------------------
@functools.lru_cache(maxsize=1)
def _min_grid_steps():
    """>=2 grid steps only on 2-TensorCore chips (v7x); 1 is fine on v5e/v6e."""
    try:
        kind = jax.devices()[0].device_kind.lower()
        if "v7" in kind or "7x" in kind:
            return 2
    except Exception:
        pass
    return 1


def _bucket_nobj(n):
    for b in NOBJ_BUCKETS:
        if n <= b:
            return b
    # TODO(synk): >128 objects would want a fori_loop over 8-sublane object
    # chunks; unsupported here.
    raise ValueError(f"too many objects ({n}); max supported is {NOBJ_BUCKETS[-1]}")


def _choose_tile(num_a, nobj_pad, min_steps):
    """TILE_A coupled to NOBJ_PAD so per-step temps stay ~ELEM_BUDGET elems."""
    budget_tile = min(MAX_TILE_A,
                      max(MIN_TILE_A, (ELEM_BUDGET // nobj_pad) // 128 * 128))
    steps = max(_cdiv(num_a, budget_tile), min_steps)
    tile = _cdiv(_cdiv(num_a, steps), 128) * 128   # smallest tile giving `steps`
    return max(MIN_TILE_A, min(tile, budget_tile))


# ------------------------------ Pallas kernel -------------------------------
def encode_kernel(anchors_ref, obj_iou_ref, obj_mat_ref, loc_ref, cls_ref, iou_ref):
    # Precomputed anchor table (8, TILE_A): x1, y1, x2, y2, cx, cy, 1/w, 1/h
    an = anchors_ref[...]
    a_x1, a_y1 = an[0:1, :], an[1:2, :]
    a_x2, a_y2 = an[2:3, :], an[3:4, :]
    a_cx, a_cy = an[4:5, :], an[5:6, :]
    inv_aw, inv_ah = an[6:7, :], an[7:8, :]

    # Object block for IoU (NOBJ_PAD, 8): x1, y1, x2, y2, area, 0, 0, 0
    ob = obj_iou_ref[...]
    b_x1, b_y1 = ob[:, 0:1], ob[:, 1:2]
    b_x2, b_y2 = ob[:, 2:3], ob[:, 3:4]
    area_b = ob[:, 4:5]

    area_a = (a_x2 - a_x1 + 1.0) * (a_y2 - a_y1 + 1.0)          # (1, TILE_A)

    # IoU (kuangliu +1 convention), shape (NOBJ_PAD, TILE_A).  Padded objects
    # are far off-image so their intersection clamps to 0 -> IoU exactly 0
    # (no valid-mask pass needed).
    iw = jnp.maximum(jnp.minimum(a_x2, b_x2) - jnp.maximum(a_x1, b_x1) + 1.0, 0.0)
    ih = jnp.maximum(jnp.minimum(a_y2, b_y2) - jnp.maximum(a_y1, b_y1) + 1.0, 0.0)
    inter = iw * ih
    iou = inter / (area_a + area_b - inter)    # true divide: threshold parity

    nobj = iou.shape[0]
    # per-anchor max / first-argmax over objects (matches torch .max(1) / np.argmax)
    max_iou = jnp.max(iou, axis=0, keepdims=True)                # (1, TILE_A)
    row = jax.lax.broadcasted_iota(jnp.int32, iou.shape, 0)
    first_id = jnp.min(jnp.where(iou >= max_iou, row, nobj), axis=0, keepdims=True)
    onehot = (row == first_id).astype(jnp.float32)               # (NOBJ_PAD, TILE_A)

    # Gather matched (cx, cy, w, h, label) with one MXU matmul (f32, exact-ish):
    #   (8, NOBJ_PAD) @ (NOBJ_PAD, TILE_A) -> (8, TILE_A)
    matched = jnp.dot(obj_mat_ref[...], onehot,
                      preferred_element_type=jnp.float32)
    m_cx, m_cy = matched[0:1, :], matched[1:2, :]
    m_w, m_h = matched[2:3, :], matched[3:4, :]
    m_lab = matched[4:5, :]

    # Faster-RCNN box coder; lane-dense row stores.
    loc_ref[0:1, :] = (m_cx - a_cx) * inv_aw
    loc_ref[1:2, :] = (m_cy - a_cy) * inv_ah
    loc_ref[2:3, :] = jnp.log(m_w * inv_aw)
    loc_ref[3:4, :] = jnp.log(m_h * inv_ah)

    cls = 1 + (m_lab + 0.5).astype(jnp.int32)    # +0.5: round non-negative labels
    cls = jnp.where(max_iou <= IUO_FIT_THR, 0, cls)
    if IUO_NOFIT_THR < IUO_FIT_THR:
        ignore = (max_iou > IUO_NOFIT_THR) & (max_iou <= IUO_FIT_THR)
        cls = jnp.where(ignore, -1, cls)
    cls_ref[...] = cls
    iou_ref[...] = max_iou


# --------------------------- cached call builders ----------------------------
@functools.lru_cache(maxsize=None)
def _anchor_table_np(input_size_wh):
    """Derived anchor table (8, A): x1, y1, x2, y2, cx, cy, 1/w, 1/h."""
    anchors = _get_anchor_boxes(input_size_wh)                  # (A, 4) cx cy w h
    num_a = anchors.shape[0]
    cxy, wh = anchors[:, :2], anchors[:, 2:]
    xy1 = cxy - wh / 2.0
    xy2 = cxy + wh / 2.0
    table = np.zeros((8, num_a), np.float32)
    table[0], table[1] = xy1[:, 0], xy1[:, 1]
    table[2], table[3] = xy2[:, 0], xy2[:, 1]
    table[4], table[5] = cxy[:, 0], cxy[:, 1]
    table[6], table[7] = 1.0 / wh[:, 0], 1.0 / wh[:, 1]
    return table, num_a


@functools.lru_cache(maxsize=None)
def _anchors_device(input_size_wh, a_pad):
    """Anchor table padded to a_pad columns, on device, cached."""
    table, num_a = _anchor_table_np(input_size_wh)
    padded = np.zeros((8, a_pad), np.float32)
    padded[6:8, :] = 1.0                       # inv_w / inv_h for padded anchors
    padded[:, :num_a] = table
    return jnp.asarray(padded)


@functools.lru_cache(maxsize=None)
def _build_encode_call(a_pad, tile_a, nobj_pad):
    """Pre-bound pallas_call for a given (anchor pad, tile, object pad)."""
    return pl.pallas_call(
        encode_kernel,
        out_shape=(
            jax.ShapeDtypeStruct((4, a_pad), jnp.float32),
            jax.ShapeDtypeStruct((1, a_pad), jnp.int32),
            jax.ShapeDtypeStruct((1, a_pad), jnp.float32),
        ),
        grid=(a_pad // tile_a,),
        in_specs=[
            pl.BlockSpec((8, tile_a), lambda i: (0, i)),        # anchor table
            pl.BlockSpec((nobj_pad, 8), lambda i: (0, 0)),      # objects (IoU)
            pl.BlockSpec((8, nobj_pad), lambda i: (0, 0)),      # objects (MXU LHS)
        ],
        out_specs=(
            pl.BlockSpec((4, tile_a), lambda i: (0, i)),
            pl.BlockSpec((1, tile_a), lambda i: (0, i)),
            pl.BlockSpec((1, tile_a), lambda i: (0, i)),
        ),
        compiler_params=pltpu.CompilerParams(dimension_semantics=("parallel",)),
    )


# -------------------------------- wrapper -----------------------------------
def encode(boxes_xyxy, labels, input_size_wh):
    """boxes_xyxy: [#obj,4] f32, labels: [#obj] int, input_size_wh: (w,h)."""
    input_size_wh = (float(input_size_wh[0]), float(input_size_wh[1]))
    _, num_a = _anchor_table_np(input_size_wh)

    boxes_xyxy = np.asarray(boxes_xyxy, dtype=np.float32)
    labels = np.asarray(labels, dtype=np.float32)
    nobj = boxes_xyxy.shape[0]

    if nobj == 0:   # matches the torch module's empty-boxes branch
        return (jnp.zeros((num_a, 4), jnp.float32),
                jnp.zeros((num_a,), jnp.int32),
                jnp.zeros((num_a,), jnp.float32))

    nobj_pad = _bucket_nobj(nobj)
    tile_a = _choose_tile(num_a, nobj_pad, _min_grid_steps())
    a_pad = _cdiv(num_a, tile_a) * tile_a
    anchors_dev = _anchors_device(input_size_wh, a_pad)

    # xyxy -> xywh (kuangliu change_box_order: wh = max - min + 1) + corners/area
    b_min, b_max = boxes_xyxy[:, :2], boxes_xyxy[:, 2:]
    cxy = (b_min + b_max) / 2.0
    wh = b_max - b_min + 1.0
    xy1 = cxy - wh / 2.0
    xy2 = cxy + wh / 2.0
    area = (xy2[:, 0] - xy1[:, 0] + 1.0) * (xy2[:, 1] - xy1[:, 1] + 1.0)

    # IoU block (objects on sublanes): x1, y1, x2, y2, area, 0, 0, 0.
    # Padded objects are placed far off-image -> IoU exactly 0 with every
    # anchor, and (being last) they never win the first-argmax tie-break.
    obj_iou = np.zeros((nobj_pad, 8), np.float32)
    obj_iou[:, 0:4] = FAR_AWAY
    obj_iou[:, 4] = 1.0
    obj_iou[:nobj, 0], obj_iou[:nobj, 1] = xy1[:, 0], xy1[:, 1]
    obj_iou[:nobj, 2], obj_iou[:nobj, 3] = xy2[:, 0], xy2[:, 1]
    obj_iou[:nobj, 4] = area

    # MXU-LHS block (objects on lanes): cx, cy, w, h, label, 0, 0, 0.
    obj_mat = np.zeros((8, nobj_pad), np.float32)
    obj_mat[2:4, :] = 1.0            # w=h=1 for padded columns (never selected)
    obj_mat[0, :nobj], obj_mat[1, :nobj] = cxy[:, 0], cxy[:, 1]
    obj_mat[2, :nobj], obj_mat[3, :nobj] = wh[:, 0], wh[:, 1]
    obj_mat[4, :nobj] = labels

    call = _build_encode_call(a_pad, tile_a, nobj_pad)
    loc_t, cls_t, iou_t = call(anchors_dev, jnp.asarray(obj_iou), jnp.asarray(obj_mat))

    loc = loc_t[:, :num_a].T            # (num_a, 4)
    cls = cls_t[0, :num_a]
    ious = iou_t[0, :num_a]
    return loc, cls, ious


# -------------------------- pure numpy reference ----------------------------
def encode_ref(boxes_xyxy, labels, input_size_wh):
    anchors = _get_anchor_boxes(input_size_wh)
    b_a, b_b = boxes_xyxy[:, :2], boxes_xyxy[:, 2:]
    boxes = np.concatenate([(b_a + b_b) / 2.0, b_b - b_a + 1.0], axis=1)
    a1 = anchors[:, :2] - anchors[:, 2:] / 2.0
    a2 = anchors[:, :2] + anchors[:, 2:] / 2.0
    b1 = boxes[:, :2] - boxes[:, 2:] / 2.0
    b2 = boxes[:, :2] + boxes[:, 2:] / 2.0
    lt = np.maximum(a1[:, None, :], b1[None, :, :])
    rb = np.minimum(a2[:, None, :], b2[None, :, :])
    wh = np.clip(rb - lt + 1.0, 0.0, None)
    inter = wh[..., 0] * wh[..., 1]
    area_a = (a2[:, 0] - a1[:, 0] + 1.0) * (a2[:, 1] - a1[:, 1] + 1.0)
    area_b = (b2[:, 0] - b1[:, 0] + 1.0) * (b2[:, 1] - b1[:, 1] + 1.0)
    iou = inter / (area_a[:, None] + area_b[None, :] - inter)
    max_ids = iou.argmax(1)
    max_ious = iou.max(1)
    m = boxes[max_ids]
    loc_xy = (m[:, :2] - anchors[:, :2]) / anchors[:, 2:]
    loc_wh = np.log(m[:, 2:] / anchors[:, 2:])
    loc = np.concatenate([loc_xy, loc_wh], axis=1)
    cls = 1 + labels[max_ids].astype(np.int64)
    cls[max_ious <= IUO_FIT_THR] = 0
    if IUO_NOFIT_THR < IUO_FIT_THR:
        cls[(max_ious > IUO_NOFIT_THR) & (max_ious <= IUO_FIT_THR)] = -1
    return loc.astype(np.float32), cls.astype(np.int32), max_ious.astype(np.float32)


# ----------------------------------- main ------------------------------------
if __name__ == "__main__":
    key = jax.random.PRNGKey(0)
    k_a, k_b = jax.random.split(key)

    def make_case(k, n_obj, n_classes):
        k1, k2, k3 = jax.random.split(k, 3)
        centers = jax.random.uniform(k1, (n_obj, 2), minval=8.0, maxval=56.0)
        sizes = jax.random.uniform(k2, (n_obj, 2), minval=8.0, maxval=24.0)
        boxes = np.asarray(
            jnp.concatenate([centers - sizes / 2.0, centers + sizes / 2.0], axis=1),
            dtype=np.float32)
        labels = np.asarray(jax.random.randint(k3, (n_obj,), 0, n_classes),
                            dtype=np.int32)
        return boxes, labels

    input_size = (64.0, 64.0)     # (w, h)
    cases = [make_case(k_a, 5, 3),       # small-object path: NOBJ_PAD=8, big tile
             make_case(k_b, 20, 8)]      # larger NOBJ bucket: NOBJ_PAD=32

    for boxes_xyxy, labels in cases:
        loc, cls, ious = encode(boxes_xyxy, labels, input_size)
        jax.block_until_ready((loc, cls, ious))

        loc_r, cls_r, ious_r = encode_ref(boxes_xyxy, labels, input_size)
        assert np.allclose(np.asarray(ious), ious_r, atol=1e-4, rtol=1e-4)
        assert np.allclose(np.asarray(loc), loc_r, atol=1e-3, rtol=1e-3)
        assert np.array_equal(np.asarray(cls), cls_r)

    print("KERNEL_OK")
</pallas_src>

<mosaic_0001>
module attributes {stable_mosaic.version = 11 : i64} {
  func.func @encode_kernel(%arg0: i32, %arg1: memref<8x896xf32, #tpu.memory_space<vmem>>, %arg2: memref<8x8xf32, #tpu.memory_space<vmem>>, %arg3: memref<8x8xf32, #tpu.memory_space<vmem>>, %arg4: memref<4x896xf32, #tpu.memory_space<vmem>>, %arg5: memref<1x896xi32, #tpu.memory_space<vmem>>, %arg6: memref<1x896xf32, #tpu.memory_space<vmem>>) attributes {dimension_semantics = [#tpu.dimension_semantics<parallel>], iteration_bounds = array<i64: 1>, scalar_prefetch = 0 : i64, scratch_operands = 0 : i64, tpu.core_type = #tpu.core_type<tc>, window_params = [{transform_indices = @transform_0, window_bounds = array<i64: 8, 896>}, {pipeline_mode = #tpu.pipeline_mode<synchronous>, transform_indices = @transform_1, window_bounds = array<i64: 8, 8>}, {pipeline_mode = #tpu.pipeline_mode<synchronous>, transform_indices = @transform_2, window_bounds = array<i64: 8, 8>}, {transform_indices = @transform_3, window_bounds = array<i64: 4, 896>}, {transform_indices = @transform_4, window_bounds = array<i64: 1, 896>}, {transform_indices = @transform_5, window_bounds = array<i64: 1, 896>}]} {
    %c0 = arith.constant 0 : index
    %c0_0 = arith.constant 0 : index
    %0 = vector.load %arg1[%c0, %c0_0] : memref<8x896xf32, #tpu.memory_space<vmem>>, vector<8x896xf32>
    %1 = vector.extract_strided_slice %0 {offsets = [0, 0], sizes = [1, 896], strides = [1, 1]} : vector<8x896xf32> to vector<1x896xf32>
    %2 = vector.extract_strided_slice %0 {offsets = [1, 0], sizes = [1, 896], strides = [1, 1]} : vector<8x896xf32> to vector<1x896xf32>
    %3 = vector.extract_strided_slice %0 {offsets = [2, 0], sizes = [1, 896], strides = [1, 1]} : vector<8x896xf32> to vector<1x896xf32>
    %4 = vector.extract_strided_slice %0 {offsets = [3, 0], sizes = [1, 896], strides = [1, 1]} : vector<8x896xf32> to vector<1x896xf32>
    %5 = vector.extract_strided_slice %0 {offsets = [4, 0], sizes = [1, 896], strides = [1, 1]} : vector<8x896xf32> to vector<1x896xf32>
    %6 = vector.extract_strided_slice %0 {offsets = [5, 0], sizes = [1, 896], strides = [1, 1]} : vector<8x896xf32> to vector<1x896xf32>
    %7 = vector.extract_strided_slice %0 {offsets = [6, 0], sizes = [1, 896], strides = [1, 1]} : vector<8x896xf32> to vector<1x896xf32>
    %8 = vector.extract_strided_slice %0 {offsets = [7, 0], sizes = [1, 896], strides = [1, 1]} : vector<8x896xf32> to vector<1x896xf32>
    %c0_1 = arith.constant 0 : index
    %c0_2 = arith.constant 0 : index
    %9 = vector.load %arg2[%c0_1, %c0_2] : memref<8x8xf32, #tpu.memory_space<vmem>>, vector<8x8xf32>
    %10 = vector.extract_strided_slice %9 {offsets = [0, 0], sizes = [8, 1], strides = [1, 1]} : vector<8x8xf32> to vector<8x1xf32>
    %11 = vector.extract_strided_slice %9 {offsets = [0, 1], sizes = [8, 1], strides = [1, 1]} : vector<8x8xf32> to vector<8x1xf32>
    %12 = vector.extract_strided_slice %9 {offsets = [0, 2], sizes = [8, 1], strides = [1, 1]} : vector<8x8xf32> to vector<8x1xf32>
    %13 = vector.extract_strided_slice %9 {offsets = [0, 3], sizes = [8, 1], strides = [1, 1]} : vector<8x8xf32> to vector<8x1xf32>
    %14 = vector.extract_strided_slice %9 {offsets = [0, 4], sizes = [8, 1], strides = [1, 1]} : vector<8x8xf32> to vector<8x1xf32>
    %15 = arith.subf %3, %1 : vector<1x896xf32>
    %cst = arith.constant 1.000000e+00 : f32
    %16 = vector.broadcast %cst : f32 to vector<1x896xf32>
    %17 = arith.addf %15, %16 : vector<1x896xf32>
    %18 = arith.subf %4, %2 : vector<1x896xf32>
    %cst_3 = arith.constant 1.000000e+00 : f32
    %19 = vector.broadcast %cst_3 : f32 to vector<1x896xf32>
    %20 = arith.addf %18, %19 : vector<1x896xf32>
    %21 = arith.mulf %17, %20 : vector<1x896xf32>
    %22 = vector.broadcast %3 : vector<1x896xf32> to vector<8x896xf32>
    %23 = vector.broadcast %12 : vector<8x1xf32> to vector<8x896xf32>
    %24 = arith.minimumf %22, %23 : vector<8x896xf32>
    %25 = vector.broadcast %1 : vector<1x896xf32> to vector<8x896xf32>
    %26 = vector.broadcast %10 : vector<8x1xf32> to vector<8x896xf32>
    %27 = arith.maximumf %25, %26 : vector<8x896xf32>
    %28 = arith.subf %24, %27 : vector<8x896xf32>
    %cst_4 = arith.constant 1.000000e+00 : f32
    %29 = vector.broadcast %cst_4 : f32 to vector<8x896xf32>
    %30 = arith.addf %28, %29 : vector<8x896xf32>
    %cst_5 = arith.constant 0.000000e+00 : f32
    %31 = vector.broadcast %cst_5 : f32 to vector<8x896xf32>
    %32 = arith.maximumf %30, %31 : vector<8x896xf32>
    %33 = vector.broadcast %4 : vector<1x896xf32> to vector<8x896xf32>
    %34 = vector.broadcast %13 : vector<8x1xf32> to vector<8x896xf32>
    %35 = arith.minimumf %33, %34 : vector<8x896xf32>
    %36 = vector.broadcast %2 : vector<1x896xf32> to vector<8x896xf32>
    %37 = vector.broadcast %11 : vector<8x1xf32> to vector<8x896xf32>
    %38 = arith.maximumf %36, %37 : vector<8x896xf32>
    %39 = arith.subf %35, %38 : vector<8x896xf32>
    %cst_6 = arith.constant 1.000000e+00 : f32
    %40 = vector.broadcast %cst_6 : f32 to vector<8x896xf32>
    %41 = arith.addf %39, %40 : vector<8x896xf32>
    %cst_7 = arith.constant 0.000000e+00 : f32
    %42 = vector.broadcast %cst_7 : f32 to vector<8x896xf32>
    %43 = arith.maximumf %41, %42 : vector<8x896xf32>
    %44 = arith.mulf %32, %43 : vector<8x896xf32>
    %45 = vector.broadcast %21 : vector<1x896xf32> to vector<8x896xf32>
    %46 = vector.broadcast %14 : vector<8x1xf32> to vector<8x896xf32>
    %47 = arith.addf %45, %46 : vector<8x896xf32>
    %48 = arith.subf %47, %44 : vector<8x896xf32>
    %49 = arith.divf %44, %48 : vector<8x896xf32>
    %cst_8 = arith.constant dense<0xFF800000> : vector<896xf32>
    %50 = vector.multi_reduction <maximumf>, %49, %cst_8 [0] : vector<8x896xf32> to vector<896xf32>
    %51 = vector.shape_cast %50 : vector<896xf32> to vector<1x896xf32>
    %52 = tpu.iota {dimensions = array<i32: 0>} : vector<8x896xi32>
    %53 = vector.broadcast %51 : vector<1x896xf32> to vector<8x896xf32>
    %54 = arith.cmpf oge, %49, %53 : vector<8x896xf32>
    %c8_i32 = arith.constant 8 : i32
    %55 = vector.broadcast %c8_i32 : i32 to vector<8x896xi32>
    %56 = arith.select %54, %52, %55 : vector<8x896xi1>, vector<8x896xi32>
    %cst_9 = arith.constant dense<2147483647> : vector<896xi32>
    %57 = vector.multi_reduction <minsi>, %56, %cst_9 [0] : vector<8x896xi32> to vector<896xi32>
    %58 = vector.shape_cast %57 : vector<896xi32> to vector<1x896xi32>
    %59 = vector.broadcast %58 : vector<1x896xi32> to vector<8x896xi32>
    %60 = arith.cmpi eq, %52, %59 : vector<8x896xi32>
    %61 = arith.extui %60 : vector<8x896xi1> to vector<8x896xi32>
    %62 = arith.sitofp %61 : vector<8x896xi32> to vector<8x896xf32>
    %c0_10 = arith.constant 0 : index
    %c0_11 = arith.constant 0 : index
    %63 = vector.load %arg3[%c0_10, %c0_11] : memref<8x8xf32, #tpu.memory_space<vmem>>, vector<8x8xf32>
    %cst_12 = arith.constant dense<0.000000e+00> : vector<8x896xf32>
    %64 = tpu.matmul %63, %62, %cst_12 {dimension_numbers = #tpu.dot_dimension_numbers<[1], [0], [0], [1], [0, 0, 1, 1], [], []>} : vector<8x8xf32>, vector<8x896xf32>, vector<8x896xf32> -> vector<8x896xf32>
    %65 = vector.extract_strided_slice %64 {offsets = [0, 0], sizes = [1, 896], strides = [1, 1]} : vector<8x896xf32> to vector<1x896xf32>
    %66 = vector.extract_strided_slice %64 {offsets = [1, 0], sizes = [1, 896], strides = [1, 1]} : vector<8x896xf32> to vector<1x896xf32>
    %67 = vector.extract_strided_slice %64 {offsets = [2, 0], sizes = [1, 896], strides = [1, 1]} : vector<8x896xf32> to vector<1x896xf32>
    %68 = vector.extract_strided_slice %64 {offsets = [3, 0], sizes = [1, 896], strides = [1, 1]} : vector<8x896xf32> to vector<1x896xf32>
    %69 = vector.extract_strided_slice %64 {offsets = [4, 0], sizes = [1, 896], strides = [1, 1]} : vector<8x896xf32> to vector<1x896xf32>
    %70 = arith.subf %65, %5 : vector<1x896xf32>
    %71 = arith.mulf %70, %7 : vector<1x896xf32>
    %c0_13 = arith.constant 0 : index
    %c0_14 = arith.constant 0 : index
    %72 = vector.load %arg4[%c0_13, %c0_14] : memref<4x896xf32, #tpu.memory_space<vmem>>, vector<1x896xf32>
    tpu.vector_store %arg4[%c0_13, %c0_14], %71 {strides = array<i32>} : memref<4x896xf32, #tpu.memory_space<vmem>>, vector<1x896xf32>,
    %73 = arith.subf %66, %6 : vector<1x896xf32>
    %74 = arith.mulf %73, %8 : vector<1x896xf32>
    %c1 = arith.constant 1 : index
    %c0_15 = arith.constant 0 : index
    %75 = vector.load %arg4[%c1, %c0_15] : memref<4x896xf32, #tpu.memory_space<vmem>>, vector<1x896xf32>
    tpu.vector_store %arg4[%c1, %c0_15], %74 {strides = array<i32>} : memref<4x896xf32, #tpu.memory_space<vmem>>, vector<1x896xf32>,
    %76 = arith.mulf %67, %7 : vector<1x896xf32>
    %77 = math.log %76 : vector<1x896xf32>
    %c2 = arith.constant 2 : index
    %c0_16 = arith.constant 0 : index
    %78 = vector.load %arg4[%c2, %c0_16] : memref<4x896xf32, #tpu.memory_space<vmem>>, vector<1x896xf32>
    tpu.vector_store %arg4[%c2, %c0_16], %77 {strides = array<i32>} : memref<4x896xf32, #tpu.memory_space<vmem>>, vector<1x896xf32>,
    %79 = arith.mulf %68, %8 : vector<1x896xf32>
    %80 = math.log %79 : vector<1x896xf32>
    %c3 = arith.constant 3 : index
    %c0_17 = arith.constant 0 : index
    %81 = vector.load %arg4[%c3, %c0_17] : memref<4x896xf32, #tpu.memory_space<vmem>>, vector<1x896xf32>
    tpu.vector_store %arg4[%c3, %c0_17], %80 {strides = array<i32>} : memref<4x896xf32, #tpu.memory_space<vmem>>, vector<1x896xf32>,
    %cst_18 = arith.constant 5.000000e-01 : f32
    %82 = vector.broadcast %cst_18 : f32 to vector<1x896xf32>
    %83 = arith.addf %69, %82 : vector<1x896xf32>
    %84 = arith.fptosi %83 : vector<1x896xf32> to vector<1x896xi32>
    %c1_i32 = arith.constant 1 : i32
    %85 = vector.broadcast %c1_i32 : i32 to vector<1x896xi32>
    %86 = arith.addi %85, %84 : vector<1x896xi32>
    %cst_19 = arith.constant 5.000000e-01 : f32
    %87 = vector.broadcast %cst_19 : f32 to vector<1x896xf32>
    %88 = arith.cmpf ole, %51, %87 : vector<1x896xf32>
    %c0_i32 = arith.constant 0 : i32
    %89 = vector.broadcast %c0_i32 : i32 to vector<1x896xi32>
    %90 = arith.select %88, %89, %86 : vector<1x896xi1>, vector<1x896xi32>
    %cst_20 = arith.constant 4.000000e-01 : f32
    %91 = vector.broadcast %cst_20 : f32 to vector<1x896xf32>
    %92 = arith.cmpf ogt, %51, %91 : vector<1x896xf32>
    %cst_21 = arith.constant 5.000000e-01 : f32
    %93 = vector.broadcast %cst_21 : f32 to vector<1x896xf32>
    %94 = arith.cmpf ole, %51, %93 : vector<1x896xf32>
    %95 = arith.andi %92, %94 : vector<1x896xi1>
    %c-1_i32 = arith.constant -1 : i32
    %96 = vector.broadcast %c-1_i32 : i32 to vector<1x896xi32>
    %97 = arith.select %95, %96, %90 : vector<1x896xi1>, vector<1x896xi32>
    %c0_22 = arith.constant 0 : index
    %c0_23 = arith.constant 0 : index
    %98 = vector.load %arg5[%c0_22, %c0_23] : memref<1x896xi32, #tpu.memory_space<vmem>>, vector<1x896xi32>
    tpu.vector_store %arg5[%c0_22, %c0_23], %97 {strides = array<i32>} : memref<1x896xi32, #tpu.memory_space<vmem>>, vector<1x896xi32>,
    %c0_24 = arith.constant 0 : index
    %c0_25 = arith.constant 0 : index
    %99 = vector.load %arg6[%c0_24, %c0_25] : memref<1x896xf32, #tpu.memory_space<vmem>>, vector<1x896xf32>
    tpu.vector_store %arg6[%c0_24, %c0_25], %51 {strides = array<i32>} : memref<1x896xf32, #tpu.memory_space<vmem>>, vector<1x896xf32>,
    return
  }
  func.func @transform_0(%arg0: i32) -> (i32, i32) {
    %c0_i32 = arith.constant 0 : i32
    %c0_i32_0 = arith.constant 0 : i32
    return %c0_i32, %arg0 : i32, i32
  }
  func.func @transform_1(%arg0: i32) -> (i32, i32) {
    %c0_i32 = arith.constant 0 : i32
    %c0_i32_0 = arith.constant 0 : i32
    %c0_i32_1 = arith.constant 0 : i32
    return %c0_i32, %c0_i32_0 : i32, i32
  }
  func.func @transform_2(%arg0: i32) -> (i32, i32) {
    %c0_i32 = arith.constant 0 : i32
    %c0_i32_0 = arith.constant 0 : i32
    %c0_i32_1 = arith.constant 0 : i32
    return %c0_i32, %c0_i32_0 : i32, i32
  }
  func.func @transform_3(%arg0: i32) -> (i32, i32) {
    %c0_i32 = arith.constant 0 : i32
    %c0_i32_0 = arith.constant 0 : i32
    return %c0_i32, %arg0 : i32, i32
  }
  func.func @transform_4(%arg0: i32) -> (i32, i32) {
    %c0_i32 = arith.constant 0 : i32
    %c0_i32_0 = arith.constant 0 : i32
    return %c0_i32, %arg0 : i32, i32
  }
  func.func @transform_5(%arg0: i32) -> (i32, i32) {
    %c0_i32 = arith.constant 0 : i32
    %c0_i32_0 = arith.constant 0 : i32
    return %c0_i32, %arg0 : i32, i32
  }
}

</mosaic_0001>

<llo_original>
// kernel: tpu_custom_call.1
$region0: #{tpu_custom_call.1}
  #allocation0 [shape = 'u32[]', space=smem, size = 0x4, offset = 0x4, fixed_abs, tag = 'smem constant byte address 0x4 - core index']
  #allocation1 [shape = 'u32[144,128]{1,0:T(1,128)}', space=vmem, size = 0x12000, scoped, tag = 'internal scratch']
  %s0 = inlined_call_operand.hbm [shape: f32[8,896], index: 0, kind: input, shape index: {}]
  %s1 = inlined_call_operand.hbm [shape: f32[8,8], index: 1, kind: input, shape index: {}]
  %s2 = inlined_call_operand.hbm [shape: f32[8,8], index: 2, kind: input, shape index: {}]
  %s3 = inlined_call_operand.hbm [shape: f32[4,896], index: 3, kind: output, shape index: {0}]
  %s4 = inlined_call_operand.hbm [shape: s32[1,896], index: 4, kind: output, shape index: {1}]
  %s5 = inlined_call_operand.hbm [shape: f32[1,896], index: 5, kind: output, shape index: {2}]
  %6 = xla_tuple %s3, %s4, %s5
  %s7 = sld [smem:[#allocation0]]
  $region50: #{tpu_custom_call.1} parent=0
    _
  %s9 = ssub.s32 1, %s7
  %s10 = scalar_select 0, %s9, %s7
  $region1: #{tpu_custom_call.1} parent=0
    #allocation2 [shape = 'u8[28672]{0}', space=vmem, size = 0x7000, scoped, tag = 'input window, operand 0, single buffered']
    #allocation3 [shape = 's32[1]{0}', space=sflag, size = 0x4, scoped, tag = 'scoped memory for tpu_custom_call.1']
    #allocation4 [shape = 's32[1]{0}', space=sflag, size = 0x4, scoped, tag = 'scoped memory for tpu_custom_call.1']
    #allocation5 [shape = 'u8[4096]{0}', space=vmem, size = 0x1000, scoped, tag = 'input window, operand 1, single buffered']
    #allocation6 [shape = 's32[1]{0}', space=sflag, size = 0x4, scoped, tag = 'scoped memory for tpu_custom_call.1']
    #allocation7 [shape = 'u8[4096]{0}', space=vmem, size = 0x1000, scoped, tag = 'input window, operand 2, single buffered']
    #allocation8 [shape = 'u8[14336]{0}', space=vmem, size = 0x3800, scoped, tag = 'output window, operand 0, single buffered']
    #allocation9 [shape = 'u8[3584]{0}', space=vmem, size = 0x1000, scoped, tag = 'output window, operand 1, single buffered']
    #allocation10 [shape = 's32[1]{0}', space=sflag, size = 0x4, scoped, tag = 'scoped memory for tpu_custom_call.1']
    #allocation11 [shape = 'u8[3584]{0}', space=vmem, size = 0x1000, scoped, tag = 'output window, operand 2, single buffered']
    %11 = vsyncpa [#allocation3], 0
    %12 = vsyncpa [#allocation6], 0
    %13 = vsyncpa [#allocation4], 0
    %14 = vsyncpa [#allocation10], 0
    // Predicated region
    $region2: #{tpu_custom_call.1} parent=1 // pred_check
      _
    $region3: #{tpu_custom_call.1} parent=1 // pred_check_branch
      %16 = sbr.rel (0) target = $region5
    $region4: #{tpu_custom_call.1} parent=1 // pred_region
      %s18 = ssub.s32 896, 896
      %19 = vsyncadd [#allocation3], %s18
      %s21 = sshll.u32 [#allocation2], 4
      %s22 = int_to_ptr.vmem [resolvable:$true] %s21
      %24 = dma.hbm_to_vmem [thread:$0]  %s0, 896, %s22, [#allocation3]
    $region5: #{tpu_custom_call.1} parent=1 // pred_fallthru
      _
    // Predicated region
    $region6: #{tpu_custom_call.1} parent=1 // pred_check
      _
    $region7: #{tpu_custom_call.1} parent=1 // pred_check_branch
      %26 = sbr.rel (0) target = $region9
    $region8: #{tpu_custom_call.1} parent=1 // pred_region
      %s28 = ssub.s32 128, 128
      %29 = vsyncadd [#allocation6], %s28
      %s31 = sshll.u32 [#allocation5], 4
      %s32 = int_to_ptr.vmem [resolvable:$true] %s31
      %34 = dma.hbm_to_vmem [thread:$0]  %s1, 128, %s32, [#allocation6]
    $region9: #{tpu_custom_call.1} parent=1 // pred_fallthru
      _
    // Predicated region
    $region10: #{tpu_custom_call.1} parent=1 // pred_check
      _
    $region11: #{tpu_custom_call.1} parent=1 // pred_check_branch
      %36 = sbr.rel (0) target = $region13
    $region12: #{tpu_custom_call.1} parent=1 // pred_region
      %s38 = ssub.s32 128, 128
      %39 = vsyncadd [#allocation6], %s38
      %s41 = sshll.u32 [#allocation7], 4
      %s42 = int_to_ptr.vmem [resolvable:$true] %s41
      %44 = dma.hbm_to_vmem [thread:$0]  %s2, 128, %s42, [#allocation6]
    $region13: #{tpu_custom_call.1} parent=1 // pred_fallthru
      _
    // Predicated region
    $region14: #{tpu_custom_call.1} parent=1 // pred_check
      _
    $region15: #{tpu_custom_call.1} parent=1 // pred_check_branch
      %46 = sbr.rel (0) target = $region17
    $region16: #{tpu_custom_call.1} parent=1 // pred_region
      %47 = dma.done [#allocation3], 896
    $region17: #{tpu_custom_call.1} parent=1 // pred_fallthru
      _
    // Predicated region
    $region18: #{tpu_custom_call.1} parent=1 // pred_check
      _
    $region19: #{tpu_custom_call.1} parent=1 // pred_check_branch
      %49 = sbr.rel (0) target = $region21
    $region20: #{tpu_custom_call.1} parent=1 // pred_region
      %50 = dma.done [#allocation6], 128
    $region21: #{tpu_custom_call.1} parent=1 // pred_fallthru
      _
    // Predicated region
    $region22: #{tpu_custom_call.1} parent=1 // pred_check
      _
    $region23: #{tpu_custom_call.1} parent=1 // pred_check_branch
      %52 = sbr.rel (0) target = $region25
    $region24: #{tpu_custom_call.1} parent=1 // pred_region
      %53 = dma.done [#allocation6], 128
    $region25: #{tpu_custom_call.1} parent=1 // pred_fallthru
      _
    %v54 = vld [vmem:[#allocation2] sm:$0xff]
    %v55 = vld [vmem:[#allocation2 + $0x8] sm:$0xff]
    %v56 = vld [vmem:[#allocation2 + $0x10] sm:$0xff]
    %v57 = vld [vmem:[#allocation2 + $0x18] sm:$0xff]
    %v58 = vld [vmem:[#allocation2 + $0x20] sm:$0xff]
    %v59 = vld [vmem:[#allocation2 + $0x28] sm:$0xff]
    %v60 = vld [vmem:[#allocation2 + $0x30] sm:$0xff]
    %v61 = vld [vmem:[#allocation5] sm:$0xff]
    %v69 = vrot.slane %v54, 6
    %v70 = vrot.slane %v55, 6
    %v71 = vrot.slane %v56, 6
    %v72 = vrot.slane %v57, 6
    %v73 = vrot.slane %v58, 6
    %v74 = vrot.slane %v59, 6
    %v75 = vrot.slane %v60, 6
    %v83 = vsub.f32 %v54, %v69
    %v84 = vsub.f32 %v55, %v70
    %v85 = vsub.f32 %v56, %v71
    %v86 = vsub.f32 %v57, %v72
    %v87 = vsub.f32 %v58, %v73
    %v88 = vsub.f32 %v59, %v74
    %v89 = vsub.f32 %v60, %v75
    %v90 = vadd.f32 %v83, 1.0
    %v91 = vadd.f32 %v84, 1.0
    %v92 = vadd.f32 %v85, 1.0
    %v93 = vadd.f32 %v86, 1.0
    %v94 = vadd.f32 %v87, 1.0
    %v95 = vadd.f32 %v88, 1.0
    %v96 = vadd.f32 %v89, 1.0
    %v104 = vrot.slane %v90, 1
    %v105 = vrot.slane %v91, 1
    %v106 = vrot.slane %v92, 1
    %v107 = vrot.slane %v93, 1
    %v108 = vrot.slane %v94, 1
    %v109 = vrot.slane %v95, 1
    %v110 = vrot.slane %v96, 1
    %v118 = vmul.f32 %v90, %v104
    %v119 = vmul.f32 %v91, %v105
    %v120 = vmul.f32 %v92, %v106
    %v121 = vmul.f32 %v93, %v107
    %v122 = vmul.f32 %v94, %v108
    %v123 = vmul.f32 %v95, %v109
    %v124 = vmul.f32 %v96, %v110
    %v125 = vlaneseq
    %v126 = vshrl.u32 %v125, 7
    %v127 = vsub.s32 2, %v126
    %v128 = vrot.slane %v54, %v127
    %v129 = vlaneseq
    %v130 = vshrl.u32 %v129, 7
    %v131 = vsub.s32 2, %v130
    %v132 = vrot.slane %v55, %v131
    %v133 = vlaneseq
    %v134 = vshrl.u32 %v133, 7
    %v135 = vsub.s32 2, %v134
    %v136 = vrot.slane %v56, %v135
    %v137 = vlaneseq
    %v138 = vshrl.u32 %v137, 7
    %v139 = vsub.s32 2, %v138
    %v140 = vrot.slane %v57, %v139
    %v141 = vlaneseq
    %v142 = vshrl.u32 %v141, 7
    %v143 = vsub.s32 2, %v142
    %v144 = vrot.slane %v58, %v143
    %v145 = vlaneseq
    %v146 = vshrl.u32 %v145, 7
    %v147 = vsub.s32 2, %v146
    %v148 = vrot.slane %v59, %v147
    %v149 = vlaneseq
    %v150 = vshrl.u32 %v149, 7
    %v151 = vsub.s32 2, %v150
    %v152 = vrot.slane %v60, %v151
    %154 = vset.pattern.permute.xlu0 2
    %155 = vperm.xlu0 %154, %v61
    %v156 = vpop.permute.xlu0 %155
    %v158 = vmin.f32 %v128, %v156
    %v159 = vmin.f32 %v132, %v156
    %v160 = vmin.f32 %v136, %v156
    %v161 = vmin.f32 %v140, %v156
    %v162 = vmin.f32 %v144, %v156
    %v163 = vmin.f32 %v148, %v156
    %v164 = vmin.f32 %v152, %v156
    %v165 = vlaneseq
    %v166 = vshrl.u32 %v165, 7
    %v167 = vsub.s32 0, %v166
    %v168 = vrot.slane %v54, %v167
    %v169 = vlaneseq
    %v170 = vshrl.u32 %v169, 7
    %v171 = vsub.s32 0, %v170
    %v172 = vrot.slane %v55, %v171
    %v173 = vlaneseq
    %v174 = vshrl.u32 %v173, 7
    %v175 = vsub.s32 0, %v174
    %v176 = vrot.slane %v56, %v175
    %v177 = vlaneseq
    %v178 = vshrl.u32 %v177, 7
    %v179 = vsub.s32 0, %v178
    %v180 = vrot.slane %v57, %v179
    %v181 = vlaneseq
    %v182 = vshrl.u32 %v181, 7
    %v183 = vsub.s32 0, %v182
    %v184 = vrot.slane %v58, %v183
    %v185 = vlaneseq
    %v186 = vshrl.u32 %v185, 7
    %v187 = vsub.s32 0, %v186
    %v188 = vrot.slane %v59, %v187
    %v189 = vlaneseq
    %v190 = vshrl.u32 %v189, 7
    %v191 = vsub.s32 0, %v190
    %v192 = vrot.slane %v60, %v191
    %193 = vset.pattern.permute.xlu0 0
    %194 = vperm.xlu0 %193, %v61
    %v195 = vpop.permute.xlu0 %194
    %v197 = vmax.f32 %v168, %v195
    %v198 = vmax.f32 %v172, %v195
    %v199 = vmax.f32 %v176, %v195
    %v200 = vmax.f32 %v180, %v195
    %v201 = vmax.f32 %v184, %v195
    %v202 = vmax.f32 %v188, %v195
    %v203 = vmax.f32 %v192, %v195
    %v204 = vsub.f32 %v158, %v197
    %v205 = vsub.f32 %v159, %v198
    %v206 = vsub.f32 %v160, %v199
    %v207 = vsub.f32 %v161, %v200
    %v208 = vsub.f32 %v162, %v201
    %v209 = vsub.f32 %v163, %v202
    %v210 = vsub.f32 %v164, %v203
    %v211 = vadd.f32 %v204, 1.0
    %v212 = vadd.f32 %v205, 1.0
    %v213 = vadd.f32 %v206, 1.0
    %v214 = vadd.f32 %v207, 1.0
    %v215 = vadd.f32 %v208, 1.0
    %v216 = vadd.f32 %v209, 1.0
    %v217 = vadd.f32 %v210, 1.0
    %v218 = vmax.f32 %v211, 0.0
    %v219 = vmax.f32 %v212, 0.0
    %v220 = vmax.f32 %v213, 0.0
    %v221 = vmax.f32 %v214, 0.0
    %v222 = vmax.f32 %v215, 0.0
    %v223 = vmax.f32 %v216, 0.0
    %v224 = vmax.f32 %v217, 0.0
    %v225 = vlaneseq
    %v226 = vshrl.u32 %v225, 7
    %v227 = vsub.s32 3, %v226
    %v228 = vrot.slane %v54, %v227
    %v229 = vlaneseq
    %v230 = vshrl.u32 %v229, 7
    %v231 = vsub.s32 3, %v230
    %v232 = vrot.slane %v55, %v231
    %v233 = vlaneseq
    %v234 = vshrl.u32 %v233, 7
    %v235 = vsub.s32 3, %v234
    %v236 = vrot.slane %v56, %v235
    %v237 = vlaneseq
    %v238 = vshrl.u32 %v237, 7
    %v239 = vsub.s32 3, %v238
    %v240 = vrot.slane %v57, %v239
    %v241 = vlaneseq
    %v242 = vshrl.u32 %v241, 7
    %v243 = vsub.s32 3, %v242
    %v244 = vrot.slane %v58, %v243
    %v245 = vlaneseq
    %v246 = vshrl.u32 %v245, 7
    %v247 = vsub.s32 3, %v246
    %v248 = vrot.slane %v59, %v247
    %v249 = vlaneseq
    %v250 = vshrl.u32 %v249, 7
    %v251 = vsub.s32 3, %v250
    %v252 = vrot.slane %v60, %v251
    %253 = vset.pattern.permute.xlu0 3
    %254 = vperm.xlu0 %253, %v61
    %v255 = vpop.permute.xlu0 %254
    %v257 = vmin.f32 %v228, %v255
    %v258 = vmin.f32 %v232, %v255
    %v259 = vmin.f32 %v236, %v255
    %v260 = vmin.f32 %v240, %v255
    %v261 = vmin.f32 %v244, %v255
    %v262 = vmin.f32 %v248, %v255
    %v263 = vmin.f32 %v252, %v255
    %v264 = vlaneseq
    %v265 = vshrl.u32 %v264, 7
    %v266 = vsub.s32 1, %v265
    %v267 = vrot.slane %v54, %v266
    %v268 = vlaneseq
    %v269 = vshrl.u32 %v268, 7
    %v270 = vsub.s32 1, %v269
    %v271 = vrot.slane %v55, %v270
    %v272 = vlaneseq
    %v273 = vshrl.u32 %v272, 7
    %v274 = vsub.s32 1, %v273
    %v275 = vrot.slane %v56, %v274
    %v276 = vlaneseq
    %v277 = vshrl.u32 %v276, 7
    %v278 = vsub.s32 1, %v277
    %v279 = vrot.slane %v57, %v278
    %v280 = vlaneseq
    %v281 = vshrl.u32 %v280, 7
    %v282 = vsub.s32 1, %v281
    %v283 = vrot.slane %v58, %v282
    %v284 = vlaneseq
    %v285 = vshrl.u32 %v284, 7
    %v286 = vsub.s32 1, %v285
    %v287 = vrot.slane %v59, %v286
    %v288 = vlaneseq
    %v289 = vshrl.u32 %v288, 7
    %v290 = vsub.s32 1, %v289
    %v291 = vrot.slane %v60, %v290
    %292 = vset.pattern.permute.xlu0 1
    %293 = vperm.xlu0 %292, %v61
    %v294 = vpop.permute.xlu0 %293
    %v296 = vmax.f32 %v267, %v294
    %v297 = vmax.f32 %v271, %v294
    %v298 = vmax.f32 %v275, %v294
    %v299 = vmax.f32 %v279, %v294
    %v300 = vmax.f32 %v283, %v294
    %v301 = vmax.f32 %v287, %v294
    %v302 = vmax.f32 %v291, %v294
    %v303 = vsub.f32 %v257, %v296
    %v304 = vsub.f32 %v258, %v297
    %v305 = vsub.f32 %v259, %v298
    %v306 = vsub.f32 %v260, %v299
    %v307 = vsub.f32 %v261, %v300
    %v308 = vsub.f32 %v262, %v301
    %v309 = vsub.f32 %v263, %v302
    %v310 = vadd.f32 %v303, 1.0
    %v311 = vadd.f32 %v304, 1.0
    %v312 = vadd.f32 %v305, 1.0
    %v313 = vadd.f32 %v306, 1.0
    %v314 = vadd.f32 %v307, 1.0
    %v315 = vadd.f32 %v308, 1.0
    %v316 = vadd.f32 %v309, 1.0
    %v317 = vmax.f32 %v310, 0.0
    %v318 = vmax.f32 %v311, 0.0
    %v319 = vmax.f32 %v312, 0.0
    %v320 = vmax.f32 %v313, 0.0
    %v321 = vmax.f32 %v314, 0.0
    %v322 = vmax.f32 %v315, 0.0
    %v323 = vmax.f32 %v316, 0.0
    %v324 = vmul.f32 %v218, %v317
    %v325 = vmul.f32 %v219, %v318
    %v326 = vmul.f32 %v220, %v319
    %v327 = vmul.f32 %v221, %v320
    %v328 = vmul.f32 %v222, %v321
    %v329 = vmul.f32 %v223, %v322
    %v330 = vmul.f32 %v224, %v323
    %v331 = vlaneseq
    %v332 = vshrl.u32 %v331, 7
    %v333 = vsub.s32 2, %v332
    %v334 = vrot.slane %v118, %v333
    %v335 = vlaneseq
    %v336 = vshrl.u32 %v335, 7
    %v337 = vsub.s32 2, %v336
    %v338 = vrot.slane %v119, %v337
    %v339 = vlaneseq
    %v340 = vshrl.u32 %v339, 7
    %v341 = vsub.s32 2, %v340
    %v342 = vrot.slane %v120, %v341
    %v343 = vlaneseq
    %v344 = vshrl.u32 %v343, 7
    %v345 = vsub.s32 2, %v344
    %v346 = vrot.slane %v121, %v345
    %v347 = vlaneseq
    %v348 = vshrl.u32 %v347, 7
    %v349 = vsub.s32 2, %v348
    %v350 = vrot.slane %v122, %v349
    %v351 = vlaneseq
    %v352 = vshrl.u32 %v351, 7
    %v353 = vsub.s32 2, %v352
    %v354 = vrot.slane %v123, %v353
    %v355 = vlaneseq
    %v356 = vshrl.u32 %v355, 7
    %v357 = vsub.s32 2, %v356
    %v358 = vrot.slane %v124, %v357
    %359 = vset.pattern.permute.xlu0 4
    %360 = vperm.xlu0 %359, %v61
    %v361 = vpop.permute.xlu0 %360
    %v363 = vadd.f32 %v334, %v361
    %v364 = vadd.f32 %v338, %v361
    %v365 = vadd.f32 %v342, %v361
    %v366 = vadd.f32 %v346, %v361
    %v367 = vadd.f32 %v350, %v361
    %v368 = vadd.f32 %v354, %v361
    %v369 = vadd.f32 %v358, %v361
    %v370 = vsub.f32 %v363, %v324
    %v371 = vsub.f32 %v364, %v325
    %v372 = vsub.f32 %v365, %v326
    %v373 = vsub.f32 %v366, %v327
    %v374 = vsub.f32 %v367, %v328
    %v375 = vsub.f32 %v368, %v329
    %v376 = vsub.f32 %v369, %v330
    %v377 = vrcp.pop %v370
    %v378 = vmul.f32 %v324, %v377
    %v379 = vrcp.pop %v371
    %v380 = vmul.f32 %v325, %v379
    %v381 = vrcp.pop %v372
    %v382 = vmul.f32 %v326, %v381
    %v383 = vrcp.pop %v373
    %v384 = vmul.f32 %v327, %v383
    %v385 = vrcp.pop %v374
    %v386 = vmul.f32 %v328, %v385
    %v387 = vrcp.pop %v375
    %v388 = vmul.f32 %v329, %v387
    %v389 = vrcp.pop %v376
    %v390 = vmul.f32 %v330, %v389
    %v391 = vrot.slane %v378, 4
    %v392 = vmax.f32 %v378, %v391
    %v393 = vrot.slane %v392, 2
    %v394 = vmax.f32 %v392, %v393
    %v395 = vrot.slane %v394, 1
    %v396 = vmax.f32 %v394, %v395
    %v397 = vrot.slane %v380, 4
    %v398 = vmax.f32 %v380, %v397
    %v399 = vrot.slane %v398, 2
    %v400 = vmax.f32 %v398, %v399
    %v401 = vrot.slane %v400, 1
    %v402 = vmax.f32 %v400, %v401
    %v403 = vrot.slane %v382, 4
    %v404 = vmax.f32 %v382, %v403
    %v405 = vrot.slane %v404, 2
    %v406 = vmax.f32 %v404, %v405
    %v407 = vrot.slane %v406, 1
    %v408 = vmax.f32 %v406, %v407
    %v409 = vrot.slane %v384, 4
    %v410 = vmax.f32 %v384, %v409
    %v411 = vrot.slane %v410, 2
    %v412 = vmax.f32 %v410, %v411
    %v413 = vrot.slane %v412, 1
    %v414 = vmax.f32 %v412, %v413
    %v415 = vrot.slane %v386, 4
    %v416 = vmax.f32 %v386, %v415
    %v417 = vrot.slane %v416, 2
    %v418 = vmax.f32 %v416, %v417
    %v419 = vrot.slane %v418, 1
    %v420 = vmax.f32 %v418, %v419
    %v421 = vrot.slane %v388, 4
    %v422 = vmax.f32 %v388, %v421
    %v423 = vrot.slane %v422, 2
    %v424 = vmax.f32 %v422, %v423
    %v425 = vrot.slane %v424, 1
    %v426 = vmax.f32 %v424, %v425
    %v427 = vrot.slane %v390, 4
    %v428 = vmax.f32 %v390, %v427
    %v429 = vrot.slane %v428, 2
    %v430 = vmax.f32 %v428, %v429
    %v431 = vrot.slane %v430, 1
    %v432 = vmax.f32 %v430, %v431
    %v433 = vlaneseq
    %v434 = vshrl.u32 %v433, 7
    %vm435 = vcmp.ge.f32.partialorder %v378, %v396
    %vm436 = vcmp.ge.f32.partialorder %v380, %v402
    %vm437 = vcmp.ge.f32.partialorder %v382, %v408
    %vm438 = vcmp.ge.f32.partialorder %v384, %v414
    %vm439 = vcmp.ge.f32.partialorder %v386, %v420
    %vm440 = vcmp.ge.f32.partialorder %v388, %v426
    %vm441 = vcmp.ge.f32.partialorder %v390, %v432
    %v442 = vsel %vm435, %v434, 8
    %v443 = vsel %vm436, %v434, 8
    %v444 = vsel %vm437, %v434, 8
    %v445 = vsel %vm438, %v434, 8
    %v446 = vsel %vm439, %v434, 8
    %v447 = vsel %vm440, %v434, 8
    %v448 = vsel %vm441, %v434, 8
    %v449 = vrot.slane %v442, 4
    %vm450 = vcmp.lt.s32.totalorder %v442, %v449
    %v451 = vsel %vm450, %v442, %v449
    %v452 = vrot.slane %v451, 2
    %vm453 = vcmp.lt.s32.totalorder %v451, %v452
    %v454 = vsel %vm453, %v451, %v452
    %v455 = vrot.slane %v454, 1
    %vm456 = vcmp.lt.s32.totalorder %v454, %v455
    %v457 = vsel %vm456, %v454, %v455
    %v458 = vrot.slane %v443, 4
    %vm459 = vcmp.lt.s32.totalorder %v443, %v458
    %v460 = vsel %vm459, %v443, %v458
    %v461 = vrot.slane %v460, 2
    %vm462 = vcmp.lt.s32.totalorder %v460, %v461
    %v463 = vsel %vm462, %v460, %v461
    %v464 = vrot.slane %v463, 1
    %vm465 = vcmp.lt.s32.totalorder %v463, %v464
    %v466 = vsel %vm465, %v463, %v464
    %v467 = vrot.slane %v444, 4
    %vm468 = vcmp.lt.s32.totalorder %v444, %v467
    %v469 = vsel %vm468, %v444, %v467
    %v470 = vrot.slane %v469, 2
    %vm471 = vcmp.lt.s32.totalorder %v469, %v470
    %v472 = vsel %vm471, %v469, %v470
    %v473 = vrot.slane %v472, 1
    %vm474 = vcmp.lt.s32.totalorder %v472, %v473
    %v475 = vsel %vm474, %v472, %v473
    %v476 = vrot.slane %v445, 4
    %vm477 = vcmp.lt.s32.totalorder %v445, %v476
    %v478 = vsel %vm477, %v445, %v476
    %v479 = vrot.slane %v478, 2
    %vm480 = vcmp.lt.s32.totalorder %v478, %v479
    %v481 = vsel %vm480, %v478, %v479
    %v482 = vrot.slane %v481, 1
    %vm483 = vcmp.lt.s32.totalorder %v481, %v482
    %v484 = vsel %vm483, %v481, %v482
    %v485 = vrot.slane %v446, 4
    %vm486 = vcmp.lt.s32.totalorder %v446, %v485
    %v487 = vsel %vm486, %v446, %v485
    %v488 = vrot.slane %v487, 2
    %vm489 = vcmp.lt.s32.totalorder %v487, %v488
    %v490 = vsel %vm489, %v487, %v488
    %v491 = vrot.slane %v490, 1
    %vm492 = vcmp.lt.s32.totalorder %v490, %v491
    %v493 = vsel %vm492, %v490, %v491
    %v494 = vrot.slane %v447, 4
    %vm495 = vcmp.lt.s32.totalorder %v447, %v494
    %v496 = vsel %vm495, %v447, %v494
    %v497 = vrot.slane %v496, 2
    %vm498 = vcmp.lt.s32.totalorder %v496, %v497
    %v499 = vsel %vm498, %v496, %v497
    %v500 = vrot.slane %v499, 1
    %vm501 = vcmp.lt.s32.totalorder %v499, %v500
    %v502 = vsel %vm501, %v499, %v500
    %v503 = vrot.slane %v448, 4
    %vm504 = vcmp.lt.s32.totalorder %v448, %v503
    %v505 = vsel %vm504, %v448, %v503
    %v506 = vrot.slane %v505, 2
    %vm507 = vcmp.lt.s32.totalorder %v505, %v506
    %v508 = vsel %vm507, %v505, %v506
    %v509 = vrot.slane %v508, 1
    %vm510 = vcmp.lt.s32.totalorder %v508, %v509
    %v511 = vsel %vm510, %v508, %v509
    %vm512 = vcmp.eq.s32.totalorder %v434, %v457
    %vm513 = vcmp.eq.s32.totalorder %v434, %v466
    %vm514 = vcmp.eq.s32.totalorder %v434, %v475
    %vm515 = vcmp.eq.s32.totalorder %v434, %v484
    %vm516 = vcmp.eq.s32.totalorder %v434, %v493
    %vm517 = vcmp.eq.s32.totalorder %v434, %v502
    %vm518 = vcmp.eq.s32.totalorder %v434, %v511
    %v519 = vsel %vm512, 1, 0
    %v520 = vsel %vm513, 1, 0
    %v521 = vsel %vm514, 1, 0
    %v522 = vsel %vm515, 1, 0
    %v523 = vsel %vm516, 1, 0
    %v524 = vsel %vm517, 1, 0
    %v525 = vsel %vm518, 1, 0
    %v526 = vcvt.s32.f32 %v519
    %v527 = vcvt.s32.f32 %v520
    %v528 = vcvt.s32.f32 %v521
    %v529 = vcvt.s32.f32 %v522
    %v530 = vcvt.s32.f32 %v523
    %v531 = vcvt.s32.f32 %v524
    %v532 = vcvt.s32.f32 %v525
    %v533 = vld [vmem:[#allocation7] sm:$0xff]
    %vm534 = vcmask 64512
    %v536 = vsel %vm534, %v533, 0
    %538 = vmatprep.subr.mxu0 0.0
    %539 = vmatpush1.msra.mxu0 0.0
    %540 = vmatprep.subr.mxu0 0.0
    %541 = vmatpush1.msra.mxu0 0.0
    %542 = vmatprep.subr.mxu0 0.0
    %543 = vmatpush1.msra.mxu0 0.0
    %544 = vmatprep.subr.mxu0 0.0
    %545 = vmatpush1.msra.mxu0 0.0
    %546 = vmatprep.subr.mxu0 0.0
    %547 = vmatpush1.msra.mxu0 0.0
    %548 = vmatprep.subr.mxu0 0.0
    %549 = vmatpush1.msra.mxu0 0.0
    %550 = vmatprep.subr.mxu0 0.0
    %551 = vmatpush1.msra.mxu0 0.0
    %552 = vmatprep.subr.mxu0 0.0
    %553 = vmatpush1.msra.mxu0 0.0
    %554 = vmatprep.subr.mxu0 0.0
    %555 = vmatpush1.msra.mxu0 0.0
    %556 = vmatprep.subr.mxu0 0.0
    %557 = vmatpush1.msra.mxu0 0.0
    %558 = vmatprep.subr.mxu0 0.0
    %559 = vmatpush1.msra.mxu0 0.0
    %560 = vmatprep.subr.mxu0 0.0
    %561 = vmatpush1.msra.mxu0 0.0
    %562 = vmatprep.subr.mxu0 0.0
    %563 = vmatpush1.msra.mxu0 0.0
    %564 = vmatprep.subr.mxu0 0.0
    %565 = vmatpush1.msra.mxu0 0.0
    %566 = vmatprep.subr.mxu0 0.0
    %567 = vmatpush1.msra.mxu0 0.0
    %568 = vmatprep.subr.mxu0 %v527
    %569 = vmatpush1.msra.mxu0 %v526
    %570 = vmatprep.subr.mxu0 0.0
    %571 = vmatpush2.msra.mxu0 0.0
    %572 = vmatprep.subr.mxu0 0.0
    %573 = vmatpush2.msra.mxu0 0.0
    %574 = vmatprep.subr.mxu0 0.0
    %575 = vmatpush2.msra.mxu0 0.0
    %576 = vmatprep.subr.mxu0 0.0
    %577 = vmatpush2.msra.mxu0 0.0
    %578 = vmatprep.subr.mxu0 0.0
    %579 = vmatpush2.msra.mxu0 0.0
    %580 = vmatprep.subr.mxu0 0.0
    %581 = vmatpush2.msra.mxu0 0.0
    %582 = vmatprep.subr.mxu0 0.0
    %583 = vmatpush2.msra.mxu0 0.0
    %584 = vmatprep.subr.mxu0 0.0
    %585 = vmatpush2.msra.mxu0 0.0
    %586 = vmatprep.subr.mxu0 0.0
    %587 = vmatpush2.msra.mxu0 0.0
    %588 = vmatprep.subr.mxu0 0.0
    %589 = vmatpush2.msra.mxu0 0.0
    %590 = vmatprep.subr.mxu0 0.0
    %591 = vmatpush2.msra.mxu0 0.0
    %592 = vmatprep.subr.mxu0 0.0
    %593 = vmatpush2.msra.mxu0 0.0
    %594 = vmatprep.subr.mxu0 0.0
    %595 = vmatpush2.msra.mxu0 0.0
    %596 = vmatprep.subr.mxu0 0.0
    %597 = vmatpush2.msra.mxu0 0.0
    %598 = vmatprep.subr.mxu0 0.0
    %599 = vmatpush2.msra.mxu0 0.0
    %600 = vmatprep.subr.mxu0 0.0
    %601 = vmatpush2.msra.mxu0 0.0
    %602 = vmatprep.mubr.f32.mxu0 0.0
    %603 = vmatmul.mubr.f32.gmra.mxu0 %v536
    %v604 = vpop.f32.mrf.mxu0
    %v605 = vadd.f32 0.0, %v604
    %v606 = vpop.f32.mrf.mxu0
    %v607 = vadd.f32 0.0, %v606
    %608 = vdwg.mxu0
    %609 = vmatprep.subr.mxu0 0.0
    %610 = vmatpush1.msra.mxu0 0.0
    %611 = vmatprep.subr.mxu0 0.0
    %612 = vmatpush1.msra.mxu0 0.0
    %613 = vmatprep.subr.mxu0 0.0
    %614 = vmatpush1.msra.mxu0 0.0
    %615 = vmatprep.subr.mxu0 0.0
    %616 = vmatpush1.msra.mxu0 0.0
    %617 = vmatprep.subr.mxu0 0.0
    %618 = vmatpush1.msra.mxu0 0.0
    %619 = vmatprep.subr.mxu0 0.0
    %620 = vmatpush1.msra.mxu0 0.0
    %621 = vmatprep.subr.mxu0 0.0
    %622 = vmatpush1.msra.mxu0 0.0
    %623 = vmatprep.subr.mxu0 0.0
    %624 = vmatpush1.msra.mxu0 0.0
    %625 = vmatprep.subr.mxu0 0.0
    %626 = vmatpush1.msra.mxu0 0.0
    %627 = vmatprep.subr.mxu0 0.0
    %628 = vmatpush1.msra.mxu0 0.0
    %629 = vmatprep.subr.mxu0 0.0
    %630 = vmatpush1.msra.mxu0 0.0
    %631 = vmatprep.subr.mxu0 0.0
    %632 = vmatpush1.msra.mxu0 0.0
    %633 = vmatprep.subr.mxu0 0.0
    %634 = vmatpush1.msra.mxu0 0.0
    %635 = vmatprep.subr.mxu0 0.0
    %636 = vmatpush1.msra.mxu0 0.0
    %637 = vmatprep.subr.mxu0 0.0
    %638 = vmatpush1.msra.mxu0 0.0
    %639 = vmatprep.subr.mxu0 %v529
    %640 = vmatpush1.msra.mxu0 %v528
    %641 = vmatprep.subr.mxu0 0.0
    %642 = vmatpush2.msra.mxu0 0.0
    %643 = vmatprep.subr.mxu0 0.0
    %644 = vmatpush2.msra.mxu0 0.0
    %645 = vmatprep.subr.mxu0 0.0
    %646 = vmatpush2.msra.mxu0 0.0
    %647 = vmatprep.subr.mxu0 0.0
    %648 = vmatpush2.msra.mxu0 0.0
    %649 = vmatprep.subr.mxu0 0.0
    %650 = vmatpush2.msra.mxu0 0.0
    %651 = vmatprep.subr.mxu0 0.0
    %652 = vmatpush2.msra.mxu0 0.0
    %653 = vmatprep.subr.mxu0 0.0
    %654 = vmatpush2.msra.mxu0 0.0
    %655 = vmatprep.subr.mxu0 0.0
    %656 = vmatpush2.msra.mxu0 0.0
    %657 = vmatprep.subr.mxu0 0.0
    %658 = vmatpush2.msra.mxu0 0.0
    %659 = vmatprep.subr.mxu0 0.0
    %660 = vmatpush2.msra.mxu0 0.0
    %661 = vmatprep.subr.mxu0 0.0
    %662 = vmatpush2.msra.mxu0 0.0
    %663 = vmatprep.subr.mxu0 0.0
    %664 = vmatpush2.msra.mxu0 0.0
    %665 = vmatprep.subr.mxu0 0.0
    %666 = vmatpush2.msra.mxu0 0.0
    %667 = vmatprep.subr.mxu0 0.0
    %668 = vmatpush2.msra.mxu0 0.0
    %669 = vmatprep.subr.mxu0 0.0
    %670 = vmatpush2.msra.mxu0 0.0
    %671 = vmatprep.subr.mxu0 0.0
    %672 = vmatpush2.msra.mxu0 0.0
    %673 = vmatprep.mubr.f32.mxu0 0.0
    %674 = vmatmul.mubr.f32.gmra.mxu0 %v536
    %v675 = vpop.f32.mrf.mxu0
    %v676 = vadd.f32 0.0, %v675
    %v677 = vpop.f32.mrf.mxu0
    %v678 = vadd.f32 0.0, %v677
    %679 = vdwg.mxu0
    %680 = vmatprep.subr.mxu0 0.0
    %681 = vmatpush1.msra.mxu0 0.0
    %682 = vmatprep.subr.mxu0 0.0
    %683 = vmatpush1.msra.mxu0 0.0
    %684 = vmatprep.subr.mxu0 0.0
    %685 = vmatpush1.msra.mxu0 0.0
    %686 = vmatprep.subr.mxu0 0.0
    %687 = vmatpush1.msra.mxu0 0.0
    %688 = vmatprep.subr.mxu0 0.0
    %689 = vmatpush1.msra.mxu0 0.0
    %690 = vmatprep.subr.mxu0 0.0
    %691 = vmatpush1.msra.mxu0 0.0
    %692 = vmatprep.subr.mxu0 0.0
    %693 = vmatpush1.msra.mxu0 0.0
    %694 = vmatprep.subr.mxu0 0.0
    %695 = vmatpush1.msra.mxu0 0.0
    %696 = vmatprep.subr.mxu0 0.0
    %697 = vmatpush1.msra.mxu0 0.0
    %698 = vmatprep.subr.mxu0 0.0
    %699 = vmatpush1.msra.mxu0 0.0
    %700 = vmatprep.subr.mxu0 0.0
    %701 = vmatpush1.msra.mxu0 0.0
    %702 = vmatprep.subr.mxu0 0.0
    %703 = vmatpush1.msra.mxu0 0.0
    %704 = vmatprep.subr.mxu0 0.0
    %705 = vmatpush1.msra.mxu0 0.0
    %706 = vmatprep.subr.mxu0 0.0
    %707 = vmatpush1.msra.mxu0 0.0
    %708 = vmatprep.subr.mxu0 0.0
    %709 = vmatpush1.msra.mxu0 0.0
    %710 = vmatprep.subr.mxu0 %v531
    %711 = vmatpush1.msra.mxu0 %v530
    %712 = vmatprep.subr.mxu0 0.0
    %713 = vmatpush2.msra.mxu0 0.0
    %714 = vmatprep.subr.mxu0 0.0
    %715 = vmatpush2.msra.mxu0 0.0
    %716 = vmatprep.subr.mxu0 0.0
    %717 = vmatpush2.msra.mxu0 0.0
    %718 = vmatprep.subr.mxu0 0.0
    %719 = vmatpush2.msra.mxu0 0.0
    %720 = vmatprep.subr.mxu0 0.0
    %721 = vmatpush2.msra.mxu0 0.0
    %722 = vmatprep.subr.mxu0 0.0
    %723 = vmatpush2.msra.mxu0 0.0
    %724 = vmatprep.subr.mxu0 0.0
    %725 = vmatpush2.msra.mxu0 0.0
    %726 = vmatprep.subr.mxu0 0.0
    %727 = vmatpush2.msra.mxu0 0.0
    %728 = vmatprep.subr.mxu0 0.0
    %729 = vmatpush2.msra.mxu0 0.0
    %730 = vmatprep.subr.mxu0 0.0
    %731 = vmatpush2.msra.mxu0 0.0
    %732 = vmatprep.subr.mxu0 0.0
    %733 = vmatpush2.msra.mxu0 0.0
    %734 = vmatprep.subr.mxu0 0.0
    %735 = vmatpush2.msra.mxu0 0.0
    %736 = vmatprep.subr.mxu0 0.0
    %737 = vmatpush2.msra.mxu0 0.0
    %738 = vmatprep.subr.mxu0 0.0
    %739 = vmatpush2.msra.mxu0 0.0
    %740 = vmatprep.subr.mxu0 0.0
    %741 = vmatpush2.msra.mxu0 0.0
    %742 = vmatprep.subr.mxu0 0.0
    %743 = vmatpush2.msra.mxu0 0.0
    %744 = vmatprep.mubr.f32.mxu0 0.0
    %745 = vmatmul.mubr.f32.gmra.mxu0 %v536
    %v746 = vpop.f32.mrf.mxu0
    %v747 = vadd.f32 0.0, %v746
    %v748 = vpop.f32.mrf.mxu0
    %v749 = vadd.f32 0.0, %v748
    %750 = vdwg.mxu0
    %751 = vmatprep.subr.mxu0 0.0
    %752 = vmatpush1.msra.mxu0 0.0
    %753 = vmatprep.subr.mxu0 0.0
    %754 = vmatpush1.msra.mxu0 0.0
    %755 = vmatprep.subr.mxu0 0.0
    %756 = vmatpush1.msra.mxu0 0.0
    %757 = vmatprep.subr.mxu0 0.0
    %758 = vmatpush1.msra.mxu0 0.0
    %759 = vmatprep.subr.mxu0 0.0
    %760 = vmatpush1.msra.mxu0 0.0
    %761 = vmatprep.subr.mxu0 0.0
    %762 = vmatpush1.msra.mxu0 0.0
    %763 = vmatprep.subr.mxu0 0.0
    %764 = vmatpush1.msra.mxu0 0.0
    %765 = vmatprep.subr.mxu0 0.0
    %766 = vmatpush1.msra.mxu0 0.0
    %767 = vmatprep.subr.mxu0 0.0
    %768 = vmatpush1.msra.mxu0 0.0
    %769 = vmatprep.subr.mxu0 0.0
    %770 = vmatpush1.msra.mxu0 0.0
    %771 = vmatprep.subr.mxu0 0.0
    %772 = vmatpush1.msra.mxu0 0.0
    %773 = vmatprep.subr.mxu0 0.0
    %774 = vmatpush1.msra.mxu0 0.0
    %775 = vmatprep.subr.mxu0 0.0
    %776 = vmatpush1.msra.mxu0 0.0
    %777 = vmatprep.subr.mxu0 0.0
    %778 = vmatpush1.msra.mxu0 0.0
    %779 = vmatprep.subr.mxu0 0.0
    %780 = vmatpush1.msra.mxu0 0.0
    %781 = vmatprep.subr.mxu0 0.0
    %782 = vmatpush1.msra.mxu0 %v532
    %783 = vmatprep.subr.mxu0 0.0
    %784 = vmatpush2.msra.mxu0 0.0
    %785 = vmatprep.subr.mxu0 0.0
    %786 = vmatpush2.msra.mxu0 0.0
    %787 = vmatprep.subr.mxu0 0.0
    %788 = vmatpush2.msra.mxu0 0.0
    %789 = vmatprep.subr.mxu0 0.0
    %790 = vmatpush2.msra.mxu0 0.0
    %791 = vmatprep.subr.mxu0 0.0
    %792 = vmatpush2.msra.mxu0 0.0
    %793 = vmatprep.subr.mxu0 0.0
    %794 = vmatpush2.msra.mxu0 0.0
    %795 = vmatprep.subr.mxu0 0.0
    %796 = vmatpush2.msra.mxu0 0.0
    %797 = vmatprep.subr.mxu0 0.0
    %798 = vmatpush2.msra.mxu0 0.0
    %799 = vmatprep.subr.mxu0 0.0
    %800 = vmatpush2.msra.mxu0 0.0
    %801 = vmatprep.subr.mxu0 0.0
    %802 = vmatpush2.msra.mxu0 0.0
    %803 = vmatprep.subr.mxu0 0.0
    %804 = vmatpush2.msra.mxu0 0.0
    %805 = vmatprep.subr.mxu0 0.0
    %806 = vmatpush2.msra.mxu0 0.0
    %807 = vmatprep.subr.mxu0 0.0
    %808 = vmatpush2.msra.mxu0 0.0
    %809 = vmatprep.subr.mxu0 0.0
    %810 = vmatpush2.msra.mxu0 0.0
    %811 = vmatprep.subr.mxu0 0.0
    %812 = vmatpush2.msra.mxu0 0.0
    %813 = vmatprep.subr.mxu0 0.0
    %814 = vmatpush2.msra.mxu0 0.0
    %815 = vmatprep.mubr.f32.mxu0 0.0
    %816 = vmatmul.mubr.f32.gmra.mxu0 %v536
    %v817 = vpop.f32.mrf.mxu0
    %v818 = vadd.f32 0.0, %v817
    %v819 = vpop.f32.mrf.mxu0
    %820 = vdwg.mxu0
    %v821 = vrot.slane %v54, 4
    %v822 = vrot.slane %v55, 4
    %v823 = vrot.slane %v56, 4
    %v824 = vrot.slane %v57, 4
    %v825 = vrot.slane %v58, 4
    %v826 = vrot.slane %v59, 4
    %v827 = vrot.slane %v60, 4
    %v835 = vsub.f32 %v605, %v821
    %v836 = vsub.f32 %v607, %v822
    %v837 = vsub.f32 %v676, %v823
    %v838 = vsub.f32 %v678, %v824
    %v839 = vsub.f32 %v747, %v825
    %v840 = vsub.f32 %v749, %v826
    %v841 = vsub.f32 %v818, %v827
    %v842 = vmul.f32 %v835, %v69
    %v843 = vmul.f32 %v836, %v70
    %v844 = vmul.f32 %v837, %v71
    %v845 = vmul.f32 %v838, %v72
    %v846 = vmul.f32 %v839, %v73
    %v847 = vmul.f32 %v840, %v74
    %v848 = vmul.f32 %v841, %v75
    %v856 = vcombine.low %v842, %v843
    %v857 = vcombine.low %v844, %v845
    %v858 = vcombine.low %v846, %v847
    %v860 = vunpack.c.l.s4 1966171168
    %v861 = vunpack.c.0.s8 %v860
    %v862 = vlaneseq
    %v863 = vshrl.u32 %v862, 7
    %v864 = vsub.s32 %v861, %v863
    %v865 = vrot.slane %v856, %v864
    %v867 = vunpack.c.l.s4 1966171168
    %v868 = vunpack.c.0.s8 %v867
    %v869 = vlaneseq
    %v870 = vshrl.u32 %v869, 7
    %v871 = vsub.s32 %v868, %v870
    %v872 = vrot.slane %v857, %v871
    %v874 = vunpack.c.l.s4 1966171168
    %v875 = vunpack.c.0.s8 %v874
    %v876 = vlaneseq
    %v877 = vshrl.u32 %v876, 7
    %v878 = vsub.s32 %v875, %v877
    %v879 = vrot.slane %v858, %v878
    %v881 = vunpack.c.l.s4 1966171168
    %v882 = vunpack.c.0.s8 %v881
    %v883 = vlaneseq
    %v884 = vshrl.u32 %v883, 7
    %v885 = vsub.s32 %v882, %v884
    %v886 = vrot.slane %v848, %v885
    %v887 = vcombine.low %v865, %v872
    %v888 = vcombine.low %v879, %v886
    %v890 = vunpack.c.l.s4 1966171168
    %v891 = vunpack.c.0.s8 %v890
    %v892 = vlaneseq
    %v893 = vshrl.u32 %v892, 7
    %v894 = vsub.s32 %v891, %v893
    %v895 = vrot.slane %v887, %v894
    %v897 = vunpack.c.l.s4 1966171168
    %v898 = vunpack.c.0.s8 %v897
    %v899 = vlaneseq
    %v900 = vshrl.u32 %v899, 7
    %v901 = vsub.s32 %v898, %v900
    %v902 = vrot.slane %v888, %v901
    %v903 = vcombine.low %v895, %v902
    %v905 = vlaneseq
    %vm906 = vcmp.ge.s32.totalorder %v905, 0
    %vm907 = vcmp.lt.s32.totalorder %v905, 896
    %vm908 = vmand %vm906, %vm907
    %909 = vst.msk [vmem:[#allocation8] ss:$4 sm:$0x7f] %vm908, %v903
    %v910 = vcombine.high %v865, %v872
    %v911 = vcombine.high %v879, %v886
    %v913 = vunpack.c.l.s4 1966171168
    %v914 = vunpack.c.0.s8 %v913
    %v915 = vlaneseq
    %v916 = vshrl.u32 %v915, 7
    %v917 = vsub.s32 %v914, %v916
    %v918 = vrot.slane %v910, %v917
    %v920 = vunpack.c.l.s4 1966171168
    %v921 = vunpack.c.0.s8 %v920
    %v922 = vlaneseq
    %v923 = vshrl.u32 %v922, 7
    %v924 = vsub.s32 %v921, %v923
    %v925 = vrot.slane %v911, %v924
    %v926 = vcombine.low %v918, %v925
    %s928 = scalar_lea.vmem [#allocation8], 1
    %929 = vst.msk [vmem:[%s928] ss:$4 sm:$0x7f] %vm908, %v926
    %v930 = vmul.f32 %v605, %v821
    %v931 = vmul.f32 %v607, %v822
    %v932 = vmul.f32 %v676, %v823
    %v933 = vmul.f32 %v678, %v824
    %v934 = vmul.f32 %v747, %v825
    %v935 = vmul.f32 %v749, %v826
    %v936 = vmul.f32 %v818, %v827
    %v937 = vlog2.pop %v930
    %v938 = vmul.f32 %v937, 0.6931472
    %v939 = vlog2.pop %v931
    %v940 = vmul.f32 %v939, 0.6931472
    %v941 = vlog2.pop %v932
    %v942 = vmul.f32 %v941, 0.6931472
    %v943 = vlog2.pop %v933
    %v944 = vmul.f32 %v943, 0.6931472
    %v945 = vlog2.pop %v934
    %v946 = vmul.f32 %v945, 0.6931472
    %v947 = vlog2.pop %v935
    %v948 = vmul.f32 %v947, 0.6931472
    %v949 = vlog2.pop %v936
    %v950 = vmul.f32 %v949, 0.6931472
    %v958 = vcombine.low %v938, %v940
    %v959 = vcombine.low %v942, %v944
    %v960 = vcombine.low %v946, %v948
    %v962 = vunpack.c.l.s4 1966171168
    %v963 = vunpack.c.0.s8 %v962
    %v964 = vlaneseq
    %v965 = vshrl.u32 %v964, 7
    %v966 = vsub.s32 %v963, %v965
    %v967 = vrot.slane %v958, %v966
    %v969 = vunpack.c.l.s4 1966171168
    %v970 = vunpack.c.0.s8 %v969
    %v971 = vlaneseq
    %v972 = vshrl.u32 %v971, 7
    %v973 = vsub.s32 %v970, %v972
    %v974 = vrot.slane %v959, %v973
    %v976 = vunpack.c.l.s4 1966171168
    %v977 = vunpack.c.0.s8 %v976
    %v978 = vlaneseq
    %v979 = vshrl.u32 %v978, 7
    %v980 = vsub.s32 %v977, %v979
    %v981 = vrot.slane %v960, %v980
    %v983 = vunpack.c.l.s4 1966171168
    %v984 = vunpack.c.0.s8 %v983
    %v985 = vlaneseq
    %v986 = vshrl.u32 %v985, 7
    %v987 = vsub.s32 %v984, %v986
    %v988 = vrot.slane %v950, %v987
    %v989 = vcombine.low %v967, %v974
    %v990 = vcombine.low %v981, %v988
    %v992 = vunpack.c.l.s4 1966171168
    %v993 = vunpack.c.0.s8 %v992
    %v994 = vlaneseq
    %v995 = vshrl.u32 %v994, 7
    %v996 = vsub.s32 %v993, %v995
    %v997 = vrot.slane %v989, %v996
    %v999 = vunpack.c.l.s4 1966171168
    %v1000 = vunpack.c.0.s8 %v999
    %v1001 = vlaneseq
    %v1002 = vshrl.u32 %v1001, 7
    %v1003 = vsub.s32 %v1000, %v1002
    %v1004 = vrot.slane %v990, %v1003
    %v1005 = vcombine.high %v997, %v1004
    %s1007 = scalar_lea.vmem [#allocation8], 2
    %1008 = vst.msk [vmem:[%s1007] ss:$4 sm:$0x7f] %vm908, %v1005
    %v1009 = vcombine.high %v967, %v974
    %v1010 = vcombine.high %v981, %v988
    %v1012 = vunpack.c.l.s4 1966171168
    %v1013 = vunpack.c.0.s8 %v1012
    %v1014 = vlaneseq
    %v1015 = vshrl.u32 %v1014, 7
    %v1016 = vsub.s32 %v1013, %v1015
    %v1017 = vrot.slane %v1009, %v1016
    %v1019 = vunpack.c.l.s4 1966171168
    %v1020 = vunpack.c.0.s8 %v1019
    %v1021 = vlaneseq
    %v1022 = vshrl.u32 %v1021, 7
    %v1023 = vsub.s32 %v1020, %v1022
    %v1024 = vrot.slane %v1010, %v1023
    %v1025 = vcombine.high %v1017, %v1024
    %s1027 = scalar_lea.vmem [#allocation8], 3
    %1028 = vst.msk [vmem:[%s1027] ss:$4 sm:$0x7f] %vm908, %v1025
    %v1029 = vadd.f32 %v605, 0.5
    %v1030 = vadd.f32 %v607, 0.5
    %v1031 = vadd.f32 %v676, 0.5
    %v1032 = vadd.f32 %v678, 0.5
    %v1033 = vadd.f32 %v747, 0.5
    %v1034 = vadd.f32 %v749, 0.5
    %v1035 = vadd.f32 %v818, 0.5
    %v1036 = vcvt.f32.s32.to.zero.pseudo %v1029
    %v1037 = vcvt.f32.s32.to.zero.pseudo %v1030
    %v1038 = vcvt.f32.s32.to.zero.pseudo %v1031
    %v1039 = vcvt.f32.s32.to.zero.pseudo %v1032
    %v1040 = vcvt.f32.s32.to.zero.pseudo %v1033
    %v1041 = vcvt.f32.s32.to.zero.pseudo %v1034
    %v1042 = vcvt.f32.s32.to.zero.pseudo %v1035
    %v1043 = vadd.s32 %v1036, 1
    %v1044 = vadd.s32 %v1037, 1
    %v1045 = vadd.s32 %v1038, 1
    %v1046 = vadd.s32 %v1039, 1
    %v1047 = vadd.s32 %v1040, 1
    %v1048 = vadd.s32 %v1041, 1
    %v1049 = vadd.s32 %v1042, 1
    %vm1050 = vcmp.le.f32.partialorder %v396, 0.5
    %vm1051 = vcmp.le.f32.partialorder %v402, 0.5
    %vm1052 = vcmp.le.f32.partialorder %v408, 0.5
    %vm1053 = vcmp.le.f32.partialorder %v414, 0.5
    %vm1054 = vcmp.le.f32.partialorder %v420, 0.5
    %vm1055 = vcmp.le.f32.partialorder %v426, 0.5
    %vm1056 = vcmp.le.f32.partialorder %v432, 0.5
    %v1057 = vsel %vm1050, 0, %v1043
    %v1058 = vsel %vm1051, 0, %v1044
    %v1059 = vsel %vm1052, 0, %v1045
    %v1060 = vsel %vm1053, 0, %v1046
    %v1061 = vsel %vm1054, 0, %v1047
    %v1062 = vsel %vm1055, 0, %v1048
    %v1063 = vsel %vm1056, 0, %v1049
    %vm1064 = vcmp.gt.f32.partialorder %v396, 0.4
    %vm1065 = vcmp.gt.f32.partialorder %v402, 0.4
    %vm1066 = vcmp.gt.f32.partialorder %v408, 0.4
    %vm1067 = vcmp.gt.f32.partialorder %v414, 0.4
    %vm1068 = vcmp.gt.f32.partialorder %v420, 0.4
    %vm1069 = vcmp.gt.f32.partialorder %v426, 0.4
    %vm1070 = vcmp.gt.f32.partialorder %v432, 0.4
    %vm1071 = vmand %vm1064, %vm1050
    %vm1072 = vmand %vm1065, %vm1051
    %vm1073 = vmand %vm1066, %vm1052
    %vm1074 = vmand %vm1067, %vm1053
    %vm1075 = vmand %vm1068, %vm1054
    %vm1076 = vmand %vm1069, %vm1055
    %vm1077 = vmand %vm1070, %vm1056
    %v1078 = vsel %vm1071, 4294967295, %v1057
    %v1079 = vsel %vm1072, 4294967295, %v1058
    %v1080 = vsel %vm1073, 4294967295, %v1059
    %v1081 = vsel %vm1074, 4294967295, %v1060
    %v1082 = vsel %vm1075, 4294967295, %v1061
    %v1083 = vsel %vm1076, 4294967295, %v1062
    %v1084 = vsel %vm1077, 4294967295, %v1063
    %v1085 = vcombine.high %v1078, %v1079
    %v1086 = vcombine.high %v1080, %v1081
    %v1087 = vcombine.high %v1082, %v1083
    %v1088 = vcombine.high %v1084, %v1084
    %v1090 = vunpack.c.l.s4 1966171168
    %v1091 = vunpack.c.0.s8 %v1090
    %v1092 = vlaneseq
    %v1093 = vshrl.u32 %v1092, 7
    %v1094 = vsub.s32 %v1091, %v1093
    %v1095 = vrot.slane %v1085, %v1094
    %v1097 = vunpack.c.l.s4 1966171168
    %v1098 = vunpack.c.0.s8 %v1097
    %v1099 = vlaneseq
    %v1100 = vshrl.u32 %v1099, 7
    %v1101 = vsub.s32 %v1098, %v1100
    %v1102 = vrot.slane %v1086, %v1101
    %v1104 = vunpack.c.l.s4 1966171168
    %v1105 = vunpack.c.0.s8 %v1104
    %v1106 = vlaneseq
    %v1107 = vshrl.u32 %v1106, 7
    %v1108 = vsub.s32 %v1105, %v1107
    %v1109 = vrot.slane %v1087, %v1108
    %v1111 = vunpack.c.l.s4 1966171168
    %v1112 = vunpack.c.0.s8 %v1111
    %v1113 = vlaneseq
    %v1114 = vshrl.u32 %v1113, 7
    %v1115 = vsub.s32 %v1112, %v1114
    %v1116 = vrot.slane %v1088, %v1115
    %v1117 = vcombine.low %v1095, %v1102
    %v1118 = vcombine.low %v1109, %v1116
    %v1120 = vunpack.c.l.s4 1966171168
    %v1121 = vunpack.c.0.s8 %v1120
    %v1122 = vlaneseq
    %v1123 = vshrl.u32 %v1122, 7
    %v1124 = vsub.s32 %v1121, %v1123
    %v1125 = vrot.slane %v1117, %v1124
    %v1127 = vunpack.c.l.s4 1966171168
    %v1128 = vunpack.c.0.s8 %v1127
    %v1129 = vlaneseq
    %v1130 = vshrl.u32 %v1129, 7
    %v1131 = vsub.s32 %v1128, %v1130
    %v1132 = vrot.slane %v1118, %v1131
    %v1133 = vcombine.low %v1125, %v1132
    %1134 = vst.msk [vmem:[#allocation9] sm:$0x7f] %vm908, %v1133
    %v1142 = vcombine.low %v396, %v402
    %v1143 = vcombine.low %v408, %v414
    %v1144 = vcombine.low %v420, %v426
    %v1146 = vunpack.c.l.s4 1966171168
    %v1147 = vunpack.c.0.s8 %v1146
    %v1148 = vlaneseq
    %v1149 = vshrl.u32 %v1148, 7
    %v1150 = vsub.s32 %v1147, %v1149
    %v1151 = vrot.slane %v1142, %v1150
    %v1153 = vunpack.c.l.s4 1966171168
    %v1154 = vunpack.c.0.s8 %v1153
    %v1155 = vlaneseq
    %v1156 = vshrl.u32 %v1155, 7
    %v1157 = vsub.s32 %v1154, %v1156
    %v1158 = vrot.slane %v1143, %v1157
    %v1160 = vunpack.c.l.s4 1966171168
    %v1161 = vunpack.c.0.s8 %v1160
    %v1162 = vlaneseq
    %v1163 = vshrl.u32 %v1162, 7
    %v1164 = vsub.s32 %v1161, %v1163
    %v1165 = vrot.slane %v1144, %v1164
    %v1167 = vunpack.c.l.s4 1966171168
    %v1168 = vunpack.c.0.s8 %v1167
    %v1169 = vlaneseq
    %v1170 = vshrl.u32 %v1169, 7
    %v1171 = vsub.s32 %v1168, %v1170
    %v1172 = vrot.slane %v432, %v1171
    %v1173 = vcombine.low %v1151, %v1158
    %v1174 = vcombine.low %v1165, %v1172
    %v1176 = vunpack.c.l.s4 1966171168
    %v1177 = vunpack.c.0.s8 %v1176
    %v1178 = vlaneseq
    %v1179 = vshrl.u32 %v1178, 7
    %v1180 = vsub.s32 %v1177, %v1179
    %v1181 = vrot.slane %v1173, %v1180
    %v1183 = vunpack.c.l.s4 1966171168
    %v1184 = vunpack.c.0.s8 %v1183
    %v1185 = vlaneseq
    %v1186 = vshrl.u32 %v1185, 7
    %v1187 = vsub.s32 %v1184, %v1186
    %v1188 = vrot.slane %v1174, %v1187
    %v1189 = vcombine.low %v1181, %v1188
    %1191 = vst.msk [vmem:[#allocation11] sm:$0x7f] %vm908, %v1189
    // Predicated region
    $region26: #{tpu_custom_call.1} parent=1 // pred_check
      _
    $region27: #{tpu_custom_call.1} parent=1 // pred_check_branch
      %1193 = sbr.rel (0) target = $region29
    $region28: #{tpu_custom_call.1} parent=1 // pred_region
      %s1195 = ssub.s32 448, 448
      %1196 = vsyncadd [#allocation4], %s1195
      %s1198 = sshll.u32 [#allocation8], 4
      %s1199 = int_to_ptr.vmem [resolvable:$true] %s1198
      %1201 = dma.vmem_to_hbm [thread:$0]  %s1199, 448, %s3, [#allocation4]
    $region29: #{tpu_custom_call.1} parent=1 // pred_fallthru
      _
    // Predicated region
    $region30: #{tpu_custom_call.1} parent=1 // pred_check
      _
    $region31: #{tpu_custom_call.1} parent=1 // pred_check_branch
      %1203 = sbr.rel (0) target = $region33
    $region32: #{tpu_custom_call.1} parent=1 // pred_region
      %s1205 = ssub.s32 112, 112
      %1206 = vsyncadd [#allocation10], %s1205
      %s1208 = sshll.u32 [#allocation9], 4
      %s1209 = int_to_ptr.vmem [resolvable:$true] %s1208
      %1211 = dma.vmem_to_hbm [thread:$0]  %s1209, 112, %s4, [#allocation10]
    $region33: #{tpu_custom_call.1} parent=1 // pred_fallthru
      _
    // Predicated region
    $region34: #{tpu_custom_call.1} parent=1 // pred_check
      _
    $region35: #{tpu_custom_call.1} parent=1 // pred_check_branch
      %1213 = sbr.rel (0) target = $region37
    $region36: #{tpu_custom_call.1} parent=1 // pred_region
      %s1215 = ssub.s32 112, 112
      %1216 = vsyncadd [#allocation10], %s1215
      %s1218 = sshll.u32 [#allocation11], 4
      %s1219 = int_to_ptr.vmem [resolvable:$true] %s1218
      %1221 = dma.vmem_to_hbm [thread:$0]  %s1219, 112, %s5, [#allocation10]
    $region37: #{tpu_custom_call.1} parent=1 // pred_fallthru
      _
    // Predicated region
    $region38: #{tpu_custom_call.1} parent=1 // pred_check
      _
    $region39: #{tpu_custom_call.1} parent=1 // pred_check_branch
      %1223 = sbr.rel (0) target = $region41
    $region40: #{tpu_custom_call.1} parent=1 // pred_region
      %1224 = dma.done [#allocation4], 448
    $region41: #{tpu_custom_call.1} parent=1 // pred_fallthru
      _
    // Predicated region
    $region42: #{tpu_custom_call.1} parent=1 // pred_check
      _
    $region43: #{tpu_custom_call.1} parent=1 // pred_check_branch
      %1226 = sbr.rel (0) target = $region45
    $region44: #{tpu_custom_call.1} parent=1 // pred_region
      %1227 = dma.done [#allocation10], 112
    $region45: #{tpu_custom_call.1} parent=1 // pred_fallthru
      _
    // Predicated region
    $region46: #{tpu_custom_call.1} parent=1 // pred_check
      _
    $region47: #{tpu_custom_call.1} parent=1 // pred_check_branch
      %1229 = sbr.rel (0) target = $region49
    $region48: #{tpu_custom_call.1} parent=1 // pred_region
      %1230 = dma.done [#allocation10], 112
    $region49: #{tpu_custom_call.1} parent=1 // pred_fallthru
      _
    %1231 = vsyncpa [#allocation3], 1
    %1232 = vsyncpa [#allocation6], 1
    %1233 = vsyncpa [#allocation4], 1
    %1234 = vsyncpa [#allocation10], 1

</llo_original>
